<compile_context>
chip_gen: v7x
topology: tpu7x:2x2x1
jax: 0.10.0
libtpu: 0.0.40
codegen_flags: <defaults>
</compile_context>

<pallas_src>
import jax
import jax.numpy as jnp
from jax import lax
from jax.experimental import pallas as pl
from jax.experimental.pallas import tpu as pltpu

BN_EPS = 1e-5
NEG_BIG = -1e30  # padding bias for unused class lanes (exp() underflows to 0)


def _round_up(v, m=128):
    return ((v + m - 1) // m) * m


# ----------------------------- Pallas kernel ------------------------------- #
def rgcn_node_kernel(x_ref, a_ref,
                     w1_ref, b1_ref, g1_ref, be1_ref,
                     w2_ref, b2_ref, g2_ref, be2_ref,
                     wf_ref, bf_ref,
                     out_ref):
    n = x_ref.shape[0]                    # number of nodes
    p = g1_ref.shape[1]                   # padded hidden width (multiple of 128)
    n_slots = a_ref.shape[1] // n         # R relations + 1 root/identity slot
    inv_n = 1.0 / n

    x = x_ref[...]                        # [N, F_in]
    a = a_ref[...]                        # [N, S*N] stacked normalized adjacency (+ identity)

    def rgcn_conv(h, w_ref, bias_ref):
        # Fused message + root transform: one lane-dense matmul.
        msg = jnp.dot(h, w_ref[...], preferred_element_type=jnp.float32)     # [N, S*P]
        # Stack the per-slot message blocks along rows (128-aligned static slices).
        m_stack = jnp.concatenate(
            [msg[:, s * p:(s + 1) * p] for s in range(n_slots)], axis=0)      # [S*N, P]
        # Fused aggregation over all relations + root in a single matmul.
        return jnp.dot(a, m_stack, preferred_element_type=jnp.float32) + bias_ref[...]

    def bn_relu(h, gamma_ref, beta_ref):
        # One reduction pass: E[h] and E[h^2] together, then a single FMA.
        stats = jnp.sum(jnp.concatenate([h, h * h], axis=1),
                        axis=0, keepdims=True) * inv_n                        # [1, 2P]
        mean = stats[:, :p]
        var = stats[:, p:] - mean * mean           # biased batch variance (torch BN, training)
        scale = gamma_ref[...] * lax.rsqrt(var + BN_EPS)
        shift = beta_ref[...] - mean * scale
        return jnp.maximum(h * scale + shift, 0.0)

    # ---- layer 1 ----
    h = bn_relu(rgcn_conv(x, w1_ref, b1_ref), g1_ref, be1_ref)
    # dropout: identity (see TODO above)

    # ---- layer 2 ----
    h = bn_relu(rgcn_conv(h, w2_ref, b2_ref), g2_ref, be2_ref)

    # ---- final linear (padded to 128 classes) + log_softmax over dim=1 ----
    logits = jnp.dot(h, wf_ref[...], preferred_element_type=jnp.float32) + bf_ref[...]
    m = jnp.max(logits, axis=1, keepdims=True)
    s = logits - m
    lse = jnp.log(jnp.sum(jnp.exp(s), axis=1, keepdims=True))
    out_ref[...] = (s - lse).astype(out_ref.dtype)


# --------------------------- wrapper-side packing --------------------------- #
def pack_operands(adj, params, num_nodes):
    """Pack relation weights/adjacency into lane-dense fused operands."""
    w1, root1 = params["w1"], params["root1"]
    w2, root2 = params["w2"], params["root2"]
    hidden = w1.shape[2]
    p = _round_up(hidden)                         # padded hidden width
    c = params["wf"].shape[1]
    c_pad = _round_up(c)

    def pack_w(w, root, in_dim_pad=None):
        # blocks s=0..R-1 are relation weights, slot R is the root weight;
        # each block is padded to a full 128-lane slot.
        blocks = [w[s] for s in range(w.shape[0])] + [root]
        blocks = [jnp.pad(b, ((0, 0), (0, p - b.shape[1]))) for b in blocks]
        packed = jnp.concatenate(blocks, axis=1)                  # [in_dim, S*P]
        if in_dim_pad is not None and in_dim_pad > packed.shape[0]:
            packed = jnp.pad(packed, ((0, in_dim_pad - packed.shape[0]), (0, 0)))
        return packed

    w1_p = pack_w(w1, root1)                      # [F_in, S*P]
    w2_p = pack_w(w2, root2, in_dim_pad=p)        # [P,    S*P]

    def pad_row(v, val=0.0):
        return jnp.pad(v, ((0, 0), (0, p - v.shape[1])), constant_values=val)

    b1_p, g1_p, be1_p = pad_row(params["b1"]), pad_row(params["g1"], 1.0), pad_row(params["be1"])
    b2_p, g2_p, be2_p = pad_row(params["b2"]), pad_row(params["g2"], 1.0), pad_row(params["be2"])

    wf_p = jnp.pad(params["wf"], ((0, p - hidden), (0, c_pad - c)))
    bf_p = jnp.pad(params["bf"], ((0, 0), (0, c_pad - c)), constant_values=NEG_BIG)

    # stacked adjacency: [N, (R+1)*N]; last slot is the identity (root/self term)
    a_ext = jnp.concatenate(
        [adj, jnp.eye(num_nodes, dtype=adj.dtype)[None]], axis=0)             # [S, N, N]
    a_stack = a_ext.transpose(1, 0, 2).reshape(num_nodes, a_ext.shape[0] * num_nodes)

    return (a_stack, w1_p, b1_p, g1_p, be1_p,
            w2_p, b2_p, g2_p, be2_p, wf_p, bf_p), c_pad


# ------------------------------- forward ------------------------------------ #
@jax.jit
def rgcn_node_forward(x, adj, params):
    """x: [N, F] float32, adj: [R, N, N] float32, params: dict of weights."""
    n = x.shape[0]
    num_classes = params["wf"].shape[1]
    packed, c_pad = pack_operands(adj, params, n)
    args = (x,) + packed
    vmem_spec = pl.BlockSpec(memory_space=pltpu.MemorySpace.VMEM)
    out_padded = pl.pallas_call(
        rgcn_node_kernel,
        out_shape=jax.ShapeDtypeStruct((n, c_pad), jnp.float32),
        in_specs=[vmem_spec] * len(args),
        out_specs=vmem_spec,
    )(*args)
    return out_padded[:, :num_classes]


# --------------------------- glue / graph setup ----------------------------- #
def build_relation_adjacency(edge_index, edge_type, num_nodes, num_relations):
    """Dense normalized adjacency: A[r, i, j] = (#edges j->i of type r) / deg_r(i)."""
    src = edge_index[0]
    dst = edge_index[1]
    adj = jnp.zeros((num_relations, num_nodes, num_nodes), jnp.float32)
    adj = adj.at[edge_type, dst, src].add(1.0)
    deg = adj.sum(axis=2, keepdims=True)                  # incoming degree per relation
    adj = adj / jnp.maximum(deg, 1.0)                     # rows with deg 0 stay 0 (PyG mean)
    return adj


def init_params(key, num_node_features, hidden, num_classes, num_relations):
    ks = jax.random.split(key, 10)
    scale = 0.2
    p = {
        # layer 1 RGCNConv
        "w1": scale * jax.random.normal(ks[0], (num_relations, num_node_features, hidden), jnp.float32),
        "root1": scale * jax.random.normal(ks[1], (num_node_features, hidden), jnp.float32),
        "b1": scale * jax.random.normal(ks[2], (1, hidden), jnp.float32),
        "g1": 1.0 + 0.1 * jax.random.normal(ks[3], (1, hidden), jnp.float32),
        "be1": 0.1 * jax.random.normal(ks[4], (1, hidden), jnp.float32),
        # layer 2 RGCNConv
        "w2": scale * jax.random.normal(ks[5], (num_relations, hidden, hidden), jnp.float32),
        "root2": scale * jax.random.normal(ks[6], (hidden, hidden), jnp.float32),
        "b2": scale * jax.random.normal(ks[7], (1, hidden), jnp.float32),
        "g2": 1.0 + 0.1 * jax.random.normal(ks[8], (1, hidden), jnp.float32),
        "be2": 0.1 * jax.random.normal(ks[9], (1, hidden), jnp.float32),
        # final linear (stored as [hidden, num_classes] so forward is x @ Wf + bf)
        "wf": scale * jax.random.normal(jax.random.fold_in(key, 100), (hidden, num_classes), jnp.float32),
        "bf": scale * jax.random.normal(jax.random.fold_in(key, 101), (1, num_classes), jnp.float32),
    }
    return p


# ------------------------- pure-JAX reference check ------------------------- #
def reference_forward(x, adj, p):
    def conv(h, w, root, b):
        out = h @ root + b
        out = out + jnp.einsum("rij,rjh->ih", adj, jnp.einsum("jf,rfh->rjh", h, w))
        return out

    def bn_relu(h, g, be):
        mean = h.mean(axis=0, keepdims=True)
        var = ((h - mean) ** 2).mean(axis=0, keepdims=True)
        return jnp.maximum((h - mean) / jnp.sqrt(var + BN_EPS) * g + be, 0.0)

    h = bn_relu(conv(x, p["w1"], p["root1"], p["b1"]), p["g1"], p["be1"])
    h = bn_relu(conv(h, p["w2"], p["root2"], p["b2"]), p["g2"], p["be2"])
    logits = h @ p["wf"] + p["bf"]
    return jax.nn.log_softmax(logits, axis=1)


# ---------------------------------- main ------------------------------------ #
if __name__ == "__main__":
    key = jax.random.PRNGKey(0)

    NUM_NODES = 64
    NUM_EDGES = 256
    NUM_NODE_FEATURES = 8
    HIDDEN = 16
    NUM_CLASSES = 4
    NUM_RELATIONS = 3

    k_x, k_src, k_dst, k_et, k_p = jax.random.split(key, 5)
    x = jax.random.normal(k_x, (NUM_NODES, NUM_NODE_FEATURES), jnp.float32)
    edge_index = jnp.stack([
        jax.random.randint(k_src, (NUM_EDGES,), 0, NUM_NODES),
        jax.random.randint(k_dst, (NUM_EDGES,), 0, NUM_NODES),
    ], axis=0)                                            # [2, E]
    edge_type = jax.random.randint(k_et, (NUM_EDGES,), 0, NUM_RELATIONS)  # [E]

    adj = build_relation_adjacency(edge_index, edge_type, NUM_NODES, NUM_RELATIONS)
    params = init_params(k_p, NUM_NODE_FEATURES, HIDDEN, NUM_CLASSES, NUM_RELATIONS)

    out = rgcn_node_forward(x, adj, params)
    out = jax.block_until_ready(out)

    ref = reference_forward(x, adj, params)
    assert out.shape == (NUM_NODES, NUM_CLASSES)
    assert jnp.allclose(out, ref, atol=1e-4, rtol=1e-4), "mismatch vs pure-JAX reference"

    print("KERNEL_OK")
</pallas_src>

<mosaic_0001>
module attributes {stable_mosaic.version = 11 : i64} {
  func.func @rgcn_node_kernel(%arg0: memref<64x8xf32, #tpu.memory_space<vmem>>, %arg1: memref<64x256xf32, #tpu.memory_space<vmem>>, %arg2: memref<8x512xf32, #tpu.memory_space<vmem>>, %arg3: memref<1x128xf32, #tpu.memory_space<vmem>>, %arg4: memref<1x128xf32, #tpu.memory_space<vmem>>, %arg5: memref<1x128xf32, #tpu.memory_space<vmem>>, %arg6: memref<128x512xf32, #tpu.memory_space<vmem>>, %arg7: memref<1x128xf32, #tpu.memory_space<vmem>>, %arg8: memref<1x128xf32, #tpu.memory_space<vmem>>, %arg9: memref<1x128xf32, #tpu.memory_space<vmem>>, %arg10: memref<128x128xf32, #tpu.memory_space<vmem>>, %arg11: memref<1x128xf32, #tpu.memory_space<vmem>>, %arg12: memref<64x128xf32, #tpu.memory_space<vmem>>) attributes {dimension_semantics = [], scalar_prefetch = 0 : i64, scratch_operands = 0 : i64, tpu.core_type = #tpu.core_type<tc>} {
    %c0 = arith.constant 0 : index
    %c0_0 = arith.constant 0 : index
    %0 = vector.load %arg0[%c0, %c0_0] : memref<64x8xf32, #tpu.memory_space<vmem>>, vector<64x8xf32>
    %c0_1 = arith.constant 0 : index
    %c0_2 = arith.constant 0 : index
    %1 = vector.load %arg1[%c0_1, %c0_2] : memref<64x256xf32, #tpu.memory_space<vmem>>, vector<64x256xf32>
    %c0_3 = arith.constant 0 : index
    %c0_4 = arith.constant 0 : index
    %2 = vector.load %arg2[%c0_3, %c0_4] : memref<8x512xf32, #tpu.memory_space<vmem>>, vector<8x512xf32>
    %cst = arith.constant dense<0.000000e+00> : vector<64x512xf32>
    %3 = tpu.matmul %0, %2, %cst {dimension_numbers = #tpu.dot_dimension_numbers<[1], [0], [0], [1], [0, 0, 1, 1], [], []>} : vector<64x8xf32>, vector<8x512xf32>, vector<64x512xf32> -> vector<64x512xf32>
    %4 = vector.extract_strided_slice %3 {offsets = [0, 0], sizes = [64, 128], strides = [1, 1]} : vector<64x512xf32> to vector<64x128xf32>
    %5 = vector.extract_strided_slice %3 {offsets = [0, 128], sizes = [64, 128], strides = [1, 1]} : vector<64x512xf32> to vector<64x128xf32>
    %6 = vector.extract_strided_slice %3 {offsets = [0, 256], sizes = [64, 128], strides = [1, 1]} : vector<64x512xf32> to vector<64x128xf32>
    %7 = vector.extract_strided_slice %3 {offsets = [0, 384], sizes = [64, 128], strides = [1, 1]} : vector<64x512xf32> to vector<64x128xf32>
    %8 = tpu.concatenate %4, %5, %6, %7 in 0 : vector<64x128xf32>, vector<64x128xf32>, vector<64x128xf32>, vector<64x128xf32> -> vector<256x128xf32>
    %cst_5 = arith.constant dense<0.000000e+00> : vector<64x128xf32>
    %9 = tpu.matmul %1, %8, %cst_5 {dimension_numbers = #tpu.dot_dimension_numbers<[1], [0], [0], [1], [0, 0, 1, 1], [], []>} : vector<64x256xf32>, vector<256x128xf32>, vector<64x128xf32> -> vector<64x128xf32>
    %c0_6 = arith.constant 0 : index
    %c0_7 = arith.constant 0 : index
    %10 = vector.load %arg3[%c0_6, %c0_7] : memref<1x128xf32, #tpu.memory_space<vmem>>, vector<1x128xf32>
    %11 = vector.broadcast %10 : vector<1x128xf32> to vector<64x128xf32>
    %12 = arith.addf %9, %11 : vector<64x128xf32>
    %13 = arith.mulf %12, %12 : vector<64x128xf32>
    %14 = tpu.concatenate %12, %13 in 1 : vector<64x128xf32>, vector<64x128xf32> -> vector<64x256xf32>
    %cst_8 = arith.constant dense<0.000000e+00> : vector<256xf32>
    %15 = vector.multi_reduction <add>, %14, %cst_8 [0] : vector<64x256xf32> to vector<256xf32>
    %16 = vector.shape_cast %15 : vector<256xf32> to vector<1x256xf32>
    %cst_9 = arith.constant 1.562500e-02 : f32
    %17 = vector.broadcast %cst_9 : f32 to vector<1x256xf32>
    %18 = arith.mulf %16, %17 : vector<1x256xf32>
    %19 = vector.extract_strided_slice %18 {offsets = [0, 0], sizes = [1, 128], strides = [1, 1]} : vector<1x256xf32> to vector<1x128xf32>
    %20 = vector.extract_strided_slice %18 {offsets = [0, 128], sizes = [1, 128], strides = [1, 1]} : vector<1x256xf32> to vector<1x128xf32>
    %21 = arith.mulf %19, %19 : vector<1x128xf32>
    %22 = arith.subf %20, %21 : vector<1x128xf32>
    %c0_10 = arith.constant 0 : index
    %c0_11 = arith.constant 0 : index
    %23 = vector.load %arg4[%c0_10, %c0_11] : memref<1x128xf32, #tpu.memory_space<vmem>>, vector<1x128xf32>
    %cst_12 = arith.constant 9.99999974E-6 : f32
    %24 = vector.broadcast %cst_12 : f32 to vector<1x128xf32>
    %25 = arith.addf %22, %24 : vector<1x128xf32>
    %26 = math.rsqrt %25 : vector<1x128xf32>
    %27 = arith.mulf %23, %26 : vector<1x128xf32>
    %c0_13 = arith.constant 0 : index
    %c0_14 = arith.constant 0 : index
    %28 = vector.load %arg5[%c0_13, %c0_14] : memref<1x128xf32, #tpu.memory_space<vmem>>, vector<1x128xf32>
    %29 = arith.mulf %19, %27 : vector<1x128xf32>
    %30 = arith.subf %28, %29 : vector<1x128xf32>
    %31 = vector.broadcast %27 : vector<1x128xf32> to vector<64x128xf32>
    %32 = arith.mulf %12, %31 : vector<64x128xf32>
    %33 = vector.broadcast %30 : vector<1x128xf32> to vector<64x128xf32>
    %34 = arith.addf %32, %33 : vector<64x128xf32>
    %cst_15 = arith.constant 0.000000e+00 : f32
    %35 = vector.broadcast %cst_15 : f32 to vector<64x128xf32>
    %36 = arith.maximumf %34, %35 : vector<64x128xf32>
    %c0_16 = arith.constant 0 : index
    %c0_17 = arith.constant 0 : index
    %37 = vector.load %arg6[%c0_16, %c0_17] : memref<128x512xf32, #tpu.memory_space<vmem>>, vector<128x512xf32>
    %cst_18 = arith.constant dense<0.000000e+00> : vector<64x512xf32>
    %38 = tpu.matmul %36, %37, %cst_18 {dimension_numbers = #tpu.dot_dimension_numbers<[1], [0], [0], [1], [0, 0, 1, 1], [], []>} : vector<64x128xf32>, vector<128x512xf32>, vector<64x512xf32> -> vector<64x512xf32>
    %39 = vector.extract_strided_slice %38 {offsets = [0, 0], sizes = [64, 128], strides = [1, 1]} : vector<64x512xf32> to vector<64x128xf32>
    %40 = vector.extract_strided_slice %38 {offsets = [0, 128], sizes = [64, 128], strides = [1, 1]} : vector<64x512xf32> to vector<64x128xf32>
    %41 = vector.extract_strided_slice %38 {offsets = [0, 256], sizes = [64, 128], strides = [1, 1]} : vector<64x512xf32> to vector<64x128xf32>
    %42 = vector.extract_strided_slice %38 {offsets = [0, 384], sizes = [64, 128], strides = [1, 1]} : vector<64x512xf32> to vector<64x128xf32>
    %43 = tpu.concatenate %39, %40, %41, %42 in 0 : vector<64x128xf32>, vector<64x128xf32>, vector<64x128xf32>, vector<64x128xf32> -> vector<256x128xf32>
    %cst_19 = arith.constant dense<0.000000e+00> : vector<64x128xf32>
    %44 = tpu.matmul %1, %43, %cst_19 {dimension_numbers = #tpu.dot_dimension_numbers<[1], [0], [0], [1], [0, 0, 1, 1], [], []>} : vector<64x256xf32>, vector<256x128xf32>, vector<64x128xf32> -> vector<64x128xf32>
    %c0_20 = arith.constant 0 : index
    %c0_21 = arith.constant 0 : index
    %45 = vector.load %arg7[%c0_20, %c0_21] : memref<1x128xf32, #tpu.memory_space<vmem>>, vector<1x128xf32>
    %46 = vector.broadcast %45 : vector<1x128xf32> to vector<64x128xf32>
    %47 = arith.addf %44, %46 : vector<64x128xf32>
    %48 = arith.mulf %47, %47 : vector<64x128xf32>
    %49 = tpu.concatenate %47, %48 in 1 : vector<64x128xf32>, vector<64x128xf32> -> vector<64x256xf32>
    %cst_22 = arith.constant dense<0.000000e+00> : vector<256xf32>
    %50 = vector.multi_reduction <add>, %49, %cst_22 [0] : vector<64x256xf32> to vector<256xf32>
    %51 = vector.shape_cast %50 : vector<256xf32> to vector<1x256xf32>
    %cst_23 = arith.constant 1.562500e-02 : f32
    %52 = vector.broadcast %cst_23 : f32 to vector<1x256xf32>
    %53 = arith.mulf %51, %52 : vector<1x256xf32>
    %54 = vector.extract_strided_slice %53 {offsets = [0, 0], sizes = [1, 128], strides = [1, 1]} : vector<1x256xf32> to vector<1x128xf32>
    %55 = vector.extract_strided_slice %53 {offsets = [0, 128], sizes = [1, 128], strides = [1, 1]} : vector<1x256xf32> to vector<1x128xf32>
    %56 = arith.mulf %54, %54 : vector<1x128xf32>
    %57 = arith.subf %55, %56 : vector<1x128xf32>
    %c0_24 = arith.constant 0 : index
    %c0_25 = arith.constant 0 : index
    %58 = vector.load %arg8[%c0_24, %c0_25] : memref<1x128xf32, #tpu.memory_space<vmem>>, vector<1x128xf32>
    %cst_26 = arith.constant 9.99999974E-6 : f32
    %59 = vector.broadcast %cst_26 : f32 to vector<1x128xf32>
    %60 = arith.addf %57, %59 : vector<1x128xf32>
    %61 = math.rsqrt %60 : vector<1x128xf32>
    %62 = arith.mulf %58, %61 : vector<1x128xf32>
    %c0_27 = arith.constant 0 : index
    %c0_28 = arith.constant 0 : index
    %63 = vector.load %arg9[%c0_27, %c0_28] : memref<1x128xf32, #tpu.memory_space<vmem>>, vector<1x128xf32>
    %64 = arith.mulf %54, %62 : vector<1x128xf32>
    %65 = arith.subf %63, %64 : vector<1x128xf32>
    %66 = vector.broadcast %62 : vector<1x128xf32> to vector<64x128xf32>
    %67 = arith.mulf %47, %66 : vector<64x128xf32>
    %68 = vector.broadcast %65 : vector<1x128xf32> to vector<64x128xf32>
    %69 = arith.addf %67, %68 : vector<64x128xf32>
    %cst_29 = arith.constant 0.000000e+00 : f32
    %70 = vector.broadcast %cst_29 : f32 to vector<64x128xf32>
    %71 = arith.maximumf %69, %70 : vector<64x128xf32>
    %c0_30 = arith.constant 0 : index
    %c0_31 = arith.constant 0 : index
    %72 = vector.load %arg10[%c0_30, %c0_31] : memref<128x128xf32, #tpu.memory_space<vmem>>, vector<128x128xf32>
    %cst_32 = arith.constant dense<0.000000e+00> : vector<64x128xf32>
    %73 = tpu.matmul %71, %72, %cst_32 {dimension_numbers = #tpu.dot_dimension_numbers<[1], [0], [0], [1], [0, 0, 1, 1], [], []>} : vector<64x128xf32>, vector<128x128xf32>, vector<64x128xf32> -> vector<64x128xf32>
    %c0_33 = arith.constant 0 : index
    %c0_34 = arith.constant 0 : index
    %74 = vector.load %arg11[%c0_33, %c0_34] : memref<1x128xf32, #tpu.memory_space<vmem>>, vector<1x128xf32>
    %75 = vector.broadcast %74 : vector<1x128xf32> to vector<64x128xf32>
    %76 = arith.addf %73, %75 : vector<64x128xf32>
    %cst_35 = arith.constant dense<0xFF800000> : vector<64xf32>
    %77 = vector.multi_reduction <maximumf>, %76, %cst_35 [1] : vector<64x128xf32> to vector<64xf32>
    %78 = vector.shape_cast %77 : vector<64xf32> to vector<64x1xf32>
    %79 = vector.broadcast %78 : vector<64x1xf32> to vector<64x128xf32>
    %80 = arith.subf %76, %79 : vector<64x128xf32>
    %81 = math.exp %80 : vector<64x128xf32>
    %cst_36 = arith.constant dense<0.000000e+00> : vector<64xf32>
    %82 = vector.multi_reduction <add>, %81, %cst_36 [1] : vector<64x128xf32> to vector<64xf32>
    %83 = vector.shape_cast %82 : vector<64xf32> to vector<64x1xf32>
    %84 = math.log %83 : vector<64x1xf32>
    %85 = vector.broadcast %84 : vector<64x1xf32> to vector<64x128xf32>
    %86 = arith.subf %80, %85 : vector<64x128xf32>
    %c0_37 = arith.constant 0 : index
    %c0_38 = arith.constant 0 : index
    %87 = vector.load %arg12[%c0_37, %c0_38] : memref<64x128xf32, #tpu.memory_space<vmem>>, vector<64x128xf32>
    tpu.vector_store %arg12[%c0_37, %c0_38], %86 {strides = array<i32>} : memref<64x128xf32, #tpu.memory_space<vmem>>, vector<64x128xf32>,
    return
  }
}

</mosaic_0001>

<llo_original>
// kernel: rgcn_node_forward.1
$region0: #{rgcn_node_forward.1}
  #allocation0 [shape = 'u32[]', space=smem, size = 0x4, offset = 0x4, fixed_abs, tag = 'smem constant byte address 0x4 - core index']
  #allocation1 [shape = 'u32[144,128]{1,0:T(1,128)}', space=vmem, size = 0x12000, scoped, tag = 'internal scratch']
  %s0 = inlined_call_operand.vmem [shape: f32[64,8], index: 0, kind: input, shape index: {}]
  %s1 = inlined_call_operand.vmem [shape: f32[64,256], index: 1, kind: input, shape index: {}]
  %s2 = inlined_call_operand.vmem [shape: f32[8,512], index: 2, kind: input, shape index: {}]
  %s3 = inlined_call_operand.vmem [shape: f32[1,128], index: 3, kind: input, shape index: {}]
  %s4 = inlined_call_operand.vmem [shape: f32[1,128], index: 4, kind: input, shape index: {}]
  %s5 = inlined_call_operand.vmem [shape: f32[1,128], index: 5, kind: input, shape index: {}]
  %s6 = inlined_call_operand.vmem [shape: f32[128,512], index: 6, kind: input, shape index: {}]
  %s7 = inlined_call_operand.vmem [shape: f32[1,128], index: 7, kind: input, shape index: {}]
  %s8 = inlined_call_operand.vmem [shape: f32[1,128], index: 8, kind: input, shape index: {}]
  %s9 = inlined_call_operand.vmem [shape: f32[1,128], index: 9, kind: input, shape index: {}]
  %s10 = inlined_call_operand.vmem [shape: f32[128,128], index: 10, kind: input, shape index: {}]
  %s11 = inlined_call_operand.vmem [shape: f32[1,128], index: 11, kind: input, shape index: {}]
  %s12 = inlined_call_operand.vmem [shape: f32[64,128], index: 12, kind: output, shape index: {}]
  %s13 = sld [smem:[#allocation0]]
  $region58: #{rgcn_node_forward.1} parent=0
    _
  %s15 = ssub.s32 1, %s13
  %s16 = scalar_select 0, %s15, %s13
  // Predicated region
  $region2: #{rgcn_node_forward.1} parent=0 // pred_check
    _
  $region3: #{rgcn_node_forward.1} parent=0 // pred_check_branch
    %18 = sbr.rel (0) target = $region5
  $region4: #{rgcn_node_forward.1} parent=0 // pred_region
    _
  $region5: #{rgcn_node_forward.1} parent=0 // pred_fallthru
    _
  // Predicated region
  $region6: #{rgcn_node_forward.1} parent=0 // pred_check
    _
  $region7: #{rgcn_node_forward.1} parent=0 // pred_check_branch
    %20 = sbr.rel (0) target = $region9
  $region8: #{rgcn_node_forward.1} parent=0 // pred_region
    _
  $region9: #{rgcn_node_forward.1} parent=0 // pred_fallthru
    _
  // Predicated region
  $region10: #{rgcn_node_forward.1} parent=0 // pred_check
    _
  $region11: #{rgcn_node_forward.1} parent=0 // pred_check_branch
    %22 = sbr.rel (0) target = $region13
  $region12: #{rgcn_node_forward.1} parent=0 // pred_region
    _
  $region13: #{rgcn_node_forward.1} parent=0 // pred_fallthru
    _
  // Predicated region
  $region14: #{rgcn_node_forward.1} parent=0 // pred_check
    _
  $region15: #{rgcn_node_forward.1} parent=0 // pred_check_branch
    %24 = sbr.rel (0) target = $region17
  $region16: #{rgcn_node_forward.1} parent=0 // pred_region
    _
  $region17: #{rgcn_node_forward.1} parent=0 // pred_fallthru
    _
  // Predicated region
  $region18: #{rgcn_node_forward.1} parent=0 // pred_check
    _
  $region19: #{rgcn_node_forward.1} parent=0 // pred_check_branch
    %26 = sbr.rel (0) target = $region21
  $region20: #{rgcn_node_forward.1} parent=0 // pred_region
    _
  $region21: #{rgcn_node_forward.1} parent=0 // pred_fallthru
    _
  // Predicated region
  $region22: #{rgcn_node_forward.1} parent=0 // pred_check
    _
  $region23: #{rgcn_node_forward.1} parent=0 // pred_check_branch
    %28 = sbr.rel (0) target = $region25
  $region24: #{rgcn_node_forward.1} parent=0 // pred_region
    _
  $region25: #{rgcn_node_forward.1} parent=0 // pred_fallthru
    _
  // Predicated region
  $region26: #{rgcn_node_forward.1} parent=0 // pred_check
    _
  $region27: #{rgcn_node_forward.1} parent=0 // pred_check_branch
    %30 = sbr.rel (0) target = $region29
  $region28: #{rgcn_node_forward.1} parent=0 // pred_region
    _
  $region29: #{rgcn_node_forward.1} parent=0 // pred_fallthru
    _
  // Predicated region
  $region30: #{rgcn_node_forward.1} parent=0 // pred_check
    _
  $region31: #{rgcn_node_forward.1} parent=0 // pred_check_branch
    %32 = sbr.rel (0) target = $region33
  $region32: #{rgcn_node_forward.1} parent=0 // pred_region
    _
  $region33: #{rgcn_node_forward.1} parent=0 // pred_fallthru
    _
  // Predicated region
  $region34: #{rgcn_node_forward.1} parent=0 // pred_check
    _
  $region35: #{rgcn_node_forward.1} parent=0 // pred_check_branch
    %34 = sbr.rel (0) target = $region37
  $region36: #{rgcn_node_forward.1} parent=0 // pred_region
    _
  $region37: #{rgcn_node_forward.1} parent=0 // pred_fallthru
    _
  // Predicated region
  $region38: #{rgcn_node_forward.1} parent=0 // pred_check
    _
  $region39: #{rgcn_node_forward.1} parent=0 // pred_check_branch
    %36 = sbr.rel (0) target = $region41
  $region40: #{rgcn_node_forward.1} parent=0 // pred_region
    _
  $region41: #{rgcn_node_forward.1} parent=0 // pred_fallthru
    _
  // Predicated region
  $region42: #{rgcn_node_forward.1} parent=0 // pred_check
    _
  $region43: #{rgcn_node_forward.1} parent=0 // pred_check_branch
    %38 = sbr.rel (0) target = $region45
  $region44: #{rgcn_node_forward.1} parent=0 // pred_region
    _
  $region45: #{rgcn_node_forward.1} parent=0 // pred_fallthru
    _
  // Predicated region
  $region46: #{rgcn_node_forward.1} parent=0 // pred_check
    _
  $region47: #{rgcn_node_forward.1} parent=0 // pred_check_branch
    %40 = sbr.rel (0) target = $region49
  $region48: #{rgcn_node_forward.1} parent=0 // pred_region
    _
  $region49: #{rgcn_node_forward.1} parent=0 // pred_fallthru
    _
  %v41 = vld [vmem:[%s0] sm:$0xff]
  %v42 = vld [vmem:[%s0 + $0x8] sm:$0xff]
  %v43 = vld [vmem:[%s0 + $0x10] sm:$0xff]
  %v44 = vld [vmem:[%s0 + $0x18] sm:$0xff]
  %v45 = vld [vmem:[%s0 + $0x20] sm:$0xff]
  %v46 = vld [vmem:[%s0 + $0x28] sm:$0xff]
  %v47 = vld [vmem:[%s0 + $0x30] sm:$0xff]
  %v48 = vld [vmem:[%s0 + $0x38] sm:$0xff]
  %v49 = vld [vmem:[%s1] sm:$0xff]
  %v50 = vld [vmem:[%s1 + $0x8] sm:$0xff]
  %v51 = vld [vmem:[%s1 + $0x10] sm:$0xff]
  %v52 = vld [vmem:[%s1 + $0x18] sm:$0xff]
  %v53 = vld [vmem:[%s1 + $0x20] sm:$0xff]
  %v54 = vld [vmem:[%s1 + $0x28] sm:$0xff]
  %v55 = vld [vmem:[%s1 + $0x30] sm:$0xff]
  %v56 = vld [vmem:[%s1 + $0x38] sm:$0xff]
  %v57 = vld [vmem:[%s1 + $0x40] sm:$0xff]
  %v58 = vld [vmem:[%s1 + $0x48] sm:$0xff]
  %v59 = vld [vmem:[%s1 + $0x50] sm:$0xff]
  %v60 = vld [vmem:[%s1 + $0x58] sm:$0xff]
  %v61 = vld [vmem:[%s1 + $0x60] sm:$0xff]
  %v62 = vld [vmem:[%s1 + $0x68] sm:$0xff]
  %v63 = vld [vmem:[%s1 + $0x70] sm:$0xff]
  %v64 = vld [vmem:[%s1 + $0x78] sm:$0xff]
  %v65 = vld [vmem:[%s2] sm:$0xff]
  %v66 = vld [vmem:[%s2 + $0x8] sm:$0xff]
  %v67 = vld [vmem:[%s2 + $0x10] sm:$0xff]
  %v68 = vld [vmem:[%s2 + $0x18] sm:$0xff]
  %vm69 = vcmask 64512
  %v71 = vsel %vm69, %v41, 0
  %v74 = vsel %vm69, %v42, 0
  %v77 = vsel %vm69, %v43, 0
  %v80 = vsel %vm69, %v44, 0
  %v83 = vsel %vm69, %v45, 0
  %v86 = vsel %vm69, %v46, 0
  %v89 = vsel %vm69, %v47, 0
  %v92 = vsel %vm69, %v48, 0
  %94 = vmatprep.subr.mxu0 %v66
  %95 = vmatpush1.msra.mxu0 %v65
  %96 = vmatprep.subr.mxu0 0.0
  %97 = vmatpush1.msra.mxu0 0.0
  %98 = vmatprep.subr.mxu0 0.0
  %99 = vmatpush1.msra.mxu0 0.0
  %100 = vmatprep.subr.mxu0 0.0
  %101 = vmatpush1.msra.mxu0 0.0
  %102 = vmatprep.subr.mxu0 0.0
  %103 = vmatpush1.msra.mxu0 0.0
  %104 = vmatprep.subr.mxu0 0.0
  %105 = vmatpush1.msra.mxu0 0.0
  %106 = vmatprep.subr.mxu0 0.0
  %107 = vmatpush1.msra.mxu0 0.0
  %108 = vmatprep.subr.mxu0 0.0
  %109 = vmatpush1.msra.mxu0 0.0
  %110 = vmatprep.subr.mxu0 0.0
  %111 = vmatpush1.msra.mxu0 0.0
  %112 = vmatprep.subr.mxu0 0.0
  %113 = vmatpush1.msra.mxu0 0.0
  %114 = vmatprep.subr.mxu0 0.0
  %115 = vmatpush1.msra.mxu0 0.0
  %116 = vmatprep.subr.mxu0 0.0
  %117 = vmatpush1.msra.mxu0 0.0
  %118 = vmatprep.subr.mxu0 0.0
  %119 = vmatpush1.msra.mxu0 0.0
  %120 = vmatprep.subr.mxu0 0.0
  %121 = vmatpush1.msra.mxu0 0.0
  %122 = vmatprep.subr.mxu0 0.0
  %123 = vmatpush1.msra.mxu0 0.0
  %124 = vmatprep.subr.mxu0 0.0
  %125 = vmatpush1.msra.mxu0 0.0
  %126 = vmatprep.subr.mxu0 0.0
  %127 = vmatpush1.msra.mxu0 0.0
  %128 = vmatprep.subr.mxu0 0.0
  %129 = vmatpush1.msra.mxu0 0.0
  %130 = vmatprep.subr.mxu0 0.0
  %131 = vmatpush1.msra.mxu0 0.0
  %132 = vmatprep.subr.mxu0 0.0
  %133 = vmatpush1.msra.mxu0 0.0
  %134 = vmatprep.subr.mxu0 0.0
  %135 = vmatpush1.msra.mxu0 0.0
  %136 = vmatprep.subr.mxu0 0.0
  %137 = vmatpush1.msra.mxu0 0.0
  %138 = vmatprep.subr.mxu0 0.0
  %139 = vmatpush1.msra.mxu0 0.0
  %140 = vmatprep.subr.mxu0 0.0
  %141 = vmatpush1.msra.mxu0 0.0
  %142 = vmatprep.subr.mxu0 0.0
  %143 = vmatpush1.msra.mxu0 0.0
  %144 = vmatprep.subr.mxu0 0.0
  %145 = vmatpush1.msra.mxu0 0.0
  %146 = vmatprep.subr.mxu0 0.0
  %147 = vmatpush1.msra.mxu0 0.0
  %148 = vmatprep.subr.mxu0 0.0
  %149 = vmatpush1.msra.mxu0 0.0
  %150 = vmatprep.subr.mxu0 0.0
  %151 = vmatpush1.msra.mxu0 0.0
  %152 = vmatprep.subr.mxu0 0.0
  %153 = vmatpush1.msra.mxu0 0.0
  %154 = vmatprep.subr.mxu0 0.0
  %155 = vmatpush1.msra.mxu0 0.0
  %156 = vmatprep.subr.mxu0 0.0
  %157 = vmatpush1.msra.mxu0 0.0
  %158 = vmatprep.mubr.f32.mxu0 0.0
  %159 = vmatmul.mubr.f32.gmra.mrb[0].mxu0 %v71
  %v160 = vpop.f32.mrb[0].mxu0
  %v161 = vadd.f32 0.0, %v160
  %v162 = vpop.f32.mrb[0].mxu0
  %v163 = vadd.f32 0.0, %v162
  %164 = vmatprep.mubr.f32.mxu0 0.0
  %165 = vmatmul.mubr.f32.gmra.mrb[0].mxu0 %v74
  %v166 = vpop.f32.mrb[0].mxu0
  %v167 = vadd.f32 0.0, %v166
  %v168 = vpop.f32.mrb[0].mxu0
  %v169 = vadd.f32 0.0, %v168
  %170 = vmatprep.mubr.f32.mxu0 0.0
  %171 = vmatmul.mubr.f32.gmra.mrb[0].mxu0 %v77
  %v172 = vpop.f32.mrb[0].mxu0
  %v173 = vadd.f32 0.0, %v172
  %v174 = vpop.f32.mrb[0].mxu0
  %v175 = vadd.f32 0.0, %v174
  %176 = vmatprep.mubr.f32.mxu0 0.0
  %177 = vmatmul.mubr.f32.gmra.mrb[0].mxu0 %v80
  %v178 = vpop.f32.mrb[0].mxu0
  %v179 = vadd.f32 0.0, %v178
  %v180 = vpop.f32.mrb[0].mxu0
  %v181 = vadd.f32 0.0, %v180
  %182 = vmatprep.mubr.f32.mxu0 0.0
  %183 = vmatmul.mubr.f32.gmra.mrb[0].mxu0 %v83
  %v184 = vpop.f32.mrb[0].mxu0
  %v185 = vadd.f32 0.0, %v184
  %v186 = vpop.f32.mrb[0].mxu0
  %v187 = vadd.f32 0.0, %v186
  %188 = vmatprep.mubr.f32.mxu0 0.0
  %189 = vmatmul.mubr.f32.gmra.mrb[0].mxu0 %v86
  %v190 = vpop.f32.mrb[0].mxu0
  %v191 = vadd.f32 0.0, %v190
  %v192 = vpop.f32.mrb[0].mxu0
  %v193 = vadd.f32 0.0, %v192
  %194 = vmatprep.mubr.f32.mxu0 0.0
  %195 = vmatmul.mubr.f32.gmra.mrb[0].mxu0 %v89
  %v196 = vpop.f32.mrb[0].mxu0
  %v197 = vadd.f32 0.0, %v196
  %v198 = vpop.f32.mrb[0].mxu0
  %v199 = vadd.f32 0.0, %v198
  %200 = vmatprep.mubr.f32.mxu0 0.0
  %201 = vmatmul.mubr.f32.gmra.mrb[0].mxu0 %v92
  %v202 = vpop.f32.mrb[0].mxu0
  %v203 = vadd.f32 0.0, %v202
  %v204 = vpop.f32.mrb[0].mxu0
  %v205 = vadd.f32 0.0, %v204
  %206 = vdwg.mxu0
  %207 = vmatprep.subr.mxu0 %v68
  %208 = vmatpush1.msra.mxu0 %v67
  %209 = vmatprep.subr.mxu0 0.0
  %210 = vmatpush1.msra.mxu0 0.0
  %211 = vmatprep.subr.mxu0 0.0
  %212 = vmatpush1.msra.mxu0 0.0
  %213 = vmatprep.subr.mxu0 0.0
  %214 = vmatpush1.msra.mxu0 0.0
  %215 = vmatprep.subr.mxu0 0.0
  %216 = vmatpush1.msra.mxu0 0.0
  %217 = vmatprep.subr.mxu0 0.0
  %218 = vmatpush1.msra.mxu0 0.0
  %219 = vmatprep.subr.mxu0 0.0
  %220 = vmatpush1.msra.mxu0 0.0
  %221 = vmatprep.subr.mxu0 0.0
  %222 = vmatpush1.msra.mxu0 0.0
  %223 = vmatprep.subr.mxu0 0.0
  %224 = vmatpush1.msra.mxu0 0.0
  %225 = vmatprep.subr.mxu0 0.0
  %226 = vmatpush1.msra.mxu0 0.0
  %227 = vmatprep.subr.mxu0 0.0
  %228 = vmatpush1.msra.mxu0 0.0
  %229 = vmatprep.subr.mxu0 0.0
  %230 = vmatpush1.msra.mxu0 0.0
  %231 = vmatprep.subr.mxu0 0.0
  %232 = vmatpush1.msra.mxu0 0.0
  %233 = vmatprep.subr.mxu0 0.0
  %234 = vmatpush1.msra.mxu0 0.0
  %235 = vmatprep.subr.mxu0 0.0
  %236 = vmatpush1.msra.mxu0 0.0
  %237 = vmatprep.subr.mxu0 0.0
  %238 = vmatpush1.msra.mxu0 0.0
  %239 = vmatprep.subr.mxu0 0.0
  %240 = vmatpush1.msra.mxu0 0.0
  %241 = vmatprep.subr.mxu0 0.0
  %242 = vmatpush1.msra.mxu0 0.0
  %243 = vmatprep.subr.mxu0 0.0
  %244 = vmatpush1.msra.mxu0 0.0
  %245 = vmatprep.subr.mxu0 0.0
  %246 = vmatpush1.msra.mxu0 0.0
  %247 = vmatprep.subr.mxu0 0.0
  %248 = vmatpush1.msra.mxu0 0.0
  %249 = vmatprep.subr.mxu0 0.0
  %250 = vmatpush1.msra.mxu0 0.0
  %251 = vmatprep.subr.mxu0 0.0
  %252 = vmatpush1.msra.mxu0 0.0
  %253 = vmatprep.subr.mxu0 0.0
  %254 = vmatpush1.msra.mxu0 0.0
  %255 = vmatprep.subr.mxu0 0.0
  %256 = vmatpush1.msra.mxu0 0.0
  %257 = vmatprep.subr.mxu0 0.0
  %258 = vmatpush1.msra.mxu0 0.0
  %259 = vmatprep.subr.mxu0 0.0
  %260 = vmatpush1.msra.mxu0 0.0
  %261 = vmatprep.subr.mxu0 0.0
  %262 = vmatpush1.msra.mxu0 0.0
  %263 = vmatprep.subr.mxu0 0.0
  %264 = vmatpush1.msra.mxu0 0.0
  %265 = vmatprep.subr.mxu0 0.0
  %266 = vmatpush1.msra.mxu0 0.0
  %267 = vmatprep.subr.mxu0 0.0
  %268 = vmatpush1.msra.mxu0 0.0
  %269 = vmatprep.subr.mxu0 0.0
  %270 = vmatpush1.msra.mxu0 0.0
  %271 = vmatprep.mubr.f32.mxu0 0.0
  %272 = vmatmul.mubr.f32.gmra.mrb[0].mxu0 %v71
  %v273 = vpop.f32.mrb[0].mxu0
  %v274 = vadd.f32 0.0, %v273
  %v275 = vpop.f32.mrb[0].mxu0
  %v276 = vadd.f32 0.0, %v275
  %277 = vmatprep.mubr.f32.mxu0 0.0
  %278 = vmatmul.mubr.f32.gmra.mrb[0].mxu0 %v74
  %v279 = vpop.f32.mrb[0].mxu0
  %v280 = vadd.f32 0.0, %v279
  %v281 = vpop.f32.mrb[0].mxu0
  %v282 = vadd.f32 0.0, %v281
  %283 = vmatprep.mubr.f32.mxu0 0.0
  %284 = vmatmul.mubr.f32.gmra.mrb[0].mxu0 %v77
  %v285 = vpop.f32.mrb[0].mxu0
  %v286 = vadd.f32 0.0, %v285
  %v287 = vpop.f32.mrb[0].mxu0
  %v288 = vadd.f32 0.0, %v287
  %289 = vmatprep.mubr.f32.mxu0 0.0
  %290 = vmatmul.mubr.f32.gmra.mrb[0].mxu0 %v80
  %v291 = vpop.f32.mrb[0].mxu0
  %v292 = vadd.f32 0.0, %v291
  %v293 = vpop.f32.mrb[0].mxu0
  %v294 = vadd.f32 0.0, %v293
  %295 = vmatprep.mubr.f32.mxu0 0.0
  %296 = vmatmul.mubr.f32.gmra.mrb[0].mxu0 %v83
  %v297 = vpop.f32.mrb[0].mxu0
  %v298 = vadd.f32 0.0, %v297
  %v299 = vpop.f32.mrb[0].mxu0
  %v300 = vadd.f32 0.0, %v299
  %301 = vmatprep.mubr.f32.mxu0 0.0
  %302 = vmatmul.mubr.f32.gmra.mrb[0].mxu0 %v86
  %v303 = vpop.f32.mrb[0].mxu0
  %v304 = vadd.f32 0.0, %v303
  %v305 = vpop.f32.mrb[0].mxu0
  %v306 = vadd.f32 0.0, %v305
  %307 = vmatprep.mubr.f32.mxu0 0.0
  %308 = vmatmul.mubr.f32.gmra.mrb[0].mxu0 %v89
  %v309 = vpop.f32.mrb[0].mxu0
  %v310 = vadd.f32 0.0, %v309
  %v311 = vpop.f32.mrb[0].mxu0
  %v312 = vadd.f32 0.0, %v311
  %313 = vmatprep.mubr.f32.mxu0 0.0
  %314 = vmatmul.mubr.f32.gmra.mrb[0].mxu0 %v92
  %v315 = vpop.f32.mrb[0].mxu0
  %v316 = vadd.f32 0.0, %v315
  %v317 = vpop.f32.mrb[0].mxu0
  %v318 = vadd.f32 0.0, %v317
  %319 = vdwg.mxu0
  %v320 = vld [vmem:[%s3] sm:$0x1]
  %v322 = vlaneseq
  %v323 = vshrl.u32 %v322, 7
  %v324 = vsub.s32 0, %v323
  %v325 = vrot.slane %v320, %v324
  %327 = vmatprep.subr.mxu0 0.0
  %328 = vmatpush1.msra.mxu0 %v161
  %329 = vmatprep.subr.mxu0 0.0
  %330 = vmatpush1.msra.mxu0 %v167
  %331 = vmatprep.subr.mxu0 0.0
  %332 = vmatpush1.msra.mxu0 %v173
  %333 = vmatprep.subr.mxu0 0.0
  %334 = vmatpush1.msra.mxu0 %v179
  %335 = vmatprep.subr.mxu0 0.0
  %336 = vmatpush1.msra.mxu0 %v185
  %337 = vmatprep.subr.mxu0 0.0
  %338 = vmatpush1.msra.mxu0 %v191
  %339 = vmatprep.subr.mxu0 0.0
  %340 = vmatpush1.msra.mxu0 %v197
  %341 = vmatprep.subr.mxu0 0.0
  %342 = vmatpush1.msra.mxu0 %v203
  %343 = vmatprep.subr.mxu0 0.0
  %344 = vmatpush1.msra.mxu0 %v163
  %345 = vmatprep.subr.mxu0 0.0
  %346 = vmatpush1.msra.mxu0 %v169
  %347 = vmatprep.subr.mxu0 0.0
  %348 = vmatpush1.msra.mxu0 %v175
  %349 = vmatprep.subr.mxu0 0.0
  %350 = vmatpush1.msra.mxu0 %v181
  %351 = vmatprep.subr.mxu0 0.0
  %352 = vmatpush1.msra.mxu0 %v187
  %353 = vmatprep.subr.mxu0 0.0
  %354 = vmatpush1.msra.mxu0 %v193
  %355 = vmatprep.subr.mxu0 0.0
  %356 = vmatpush1.msra.mxu0 %v199
  %357 = vmatprep.subr.mxu0 0.0
  %358 = vmatpush1.msra.mxu0 %v205
  %359 = vmatprep.subr.mxu0 0.0
  %360 = vmatpush1.msra.mxu0 %v274
  %361 = vmatprep.subr.mxu0 0.0
  %362 = vmatpush1.msra.mxu0 %v280
  %363 = vmatprep.subr.mxu0 0.0
  %364 = vmatpush1.msra.mxu0 %v286
  %365 = vmatprep.subr.mxu0 0.0
  %366 = vmatpush1.msra.mxu0 %v292
  %367 = vmatprep.subr.mxu0 0.0
  %368 = vmatpush1.msra.mxu0 %v298
  %369 = vmatprep.subr.mxu0 0.0
  %370 = vmatpush1.msra.mxu0 %v304
  %371 = vmatprep.subr.mxu0 0.0
  %372 = vmatpush1.msra.mxu0 %v310
  %373 = vmatprep.subr.mxu0 0.0
  %374 = vmatpush1.msra.mxu0 %v316
  %375 = vmatprep.subr.mxu0 0.0
  %376 = vmatpush1.msra.mxu0 %v276
  %377 = vmatprep.subr.mxu0 0.0
  %378 = vmatpush1.msra.mxu0 %v282
  %379 = vmatprep.subr.mxu0 0.0
  %380 = vmatpush1.msra.mxu0 %v288
  %381 = vmatprep.subr.mxu0 0.0
  %382 = vmatpush1.msra.mxu0 %v294
  %383 = vmatprep.subr.mxu0 0.0
  %384 = vmatpush1.msra.mxu0 %v300
  %385 = vmatprep.subr.mxu0 0.0
  %386 = vmatpush1.msra.mxu0 %v306
  %387 = vmatprep.subr.mxu0 0.0
  %388 = vmatpush1.msra.mxu0 %v312
  %389 = vmatprep.subr.mxu0 0.0
  %390 = vmatpush1.msra.mxu0 %v318
  %391 = vmatprep.mubr.f32.mxu0 %v50
  %392 = vmatmul.mubr.f32.gmra.mrb[0].mxu0 %v49
  %v393 = vpop.f32.mrb[0].mxu0
  %v394 = vadd.f32 %v325, %v393
  %v395 = vpop.f32.mrb[0].mxu0
  %396 = vmatprep.mubr.f32.mxu0 %v52
  %397 = vmatmul.mubr.f32.gmra.mrb[0].mxu0 %v51
  %v398 = vpop.f32.mrb[0].mxu0
  %v399 = vadd.f32 %v325, %v398
  %v400 = vpop.f32.mrb[0].mxu0
  %401 = vmatprep.mubr.f32.mxu0 %v54
  %402 = vmatmul.mubr.f32.gmra.mrb[0].mxu0 %v53
  %v403 = vpop.f32.mrb[0].mxu0
  %v404 = vadd.f32 %v325, %v403
  %v405 = vpop.f32.mrb[0].mxu0
  %406 = vmatprep.mubr.f32.mxu0 %v56
  %407 = vmatmul.mubr.f32.gmra.mrb[0].mxu0 %v55
  %v408 = vpop.f32.mrb[0].mxu0
  %v409 = vadd.f32 %v325, %v408
  %v410 = vpop.f32.mrb[0].mxu0
  %411 = vmatprep.mubr.f32.mxu0 %v58
  %412 = vmatmul.mubr.f32.gmra.mrb[0].mxu0 %v57
  %v413 = vpop.f32.mrb[0].mxu0
  %v414 = vadd.f32 %v325, %v413
  %v415 = vpop.f32.mrb[0].mxu0
  %416 = vmatprep.mubr.f32.mxu0 %v60
  %417 = vmatmul.mubr.f32.gmra.mrb[0].mxu0 %v59
  %v418 = vpop.f32.mrb[0].mxu0
  %v419 = vadd.f32 %v325, %v418
  %v420 = vpop.f32.mrb[0].mxu0
  %421 = vmatprep.mubr.f32.mxu0 %v62
  %422 = vmatmul.mubr.f32.gmra.mrb[0].mxu0 %v61
  %v423 = vpop.f32.mrb[0].mxu0
  %v424 = vadd.f32 %v325, %v423
  %v425 = vpop.f32.mrb[0].mxu0
  %426 = vmatprep.mubr.f32.mxu0 %v64
  %427 = vmatmul.mubr.f32.gmra.mrb[0].mxu0 %v63
  %v428 = vpop.f32.mrb[0].mxu0
  %v429 = vadd.f32 %v325, %v428
  %v430 = vpop.f32.mrb[0].mxu0
  %431 = vdwg.mxu0
  %v432 = vmul.f32 %v394, %v394
  %v433 = vmul.f32 %v399, %v399
  %v434 = vmul.f32 %v404, %v404
  %v435 = vmul.f32 %v409, %v409
  %v436 = vmul.f32 %v414, %v414
  %v437 = vmul.f32 %v419, %v419
  %v438 = vmul.f32 %v424, %v424
  %v439 = vmul.f32 %v429, %v429
  %v440 = vadd.f32 %v394, %v399
  %v441 = vadd.f32 %v440, %v404
  %v442 = vadd.f32 %v441, %v409
  %v443 = vadd.f32 %v442, %v414
  %v444 = vadd.f32 %v443, %v419
  %v445 = vadd.f32 %v444, %v424
  %v446 = vadd.f32 %v445, %v429
  %v447 = vrot.slane %v446, 4
  %v448 = vadd.f32 %v446, %v447
  %v449 = vrot.slane %v448, 2
  %v450 = vadd.f32 %v448, %v449
  %v451 = vrot.slane %v450, 1
  %v452 = vadd.f32 %v450, %v451
  %v453 = vadd.f32 %v432, %v433
  %v454 = vadd.f32 %v453, %v434
  %v455 = vadd.f32 %v454, %v435
  %v456 = vadd.f32 %v455, %v436
  %v457 = vadd.f32 %v456, %v437
  %v458 = vadd.f32 %v457, %v438
  %v459 = vadd.f32 %v458, %v439
  %v460 = vrot.slane %v459, 4
  %v461 = vadd.f32 %v459, %v460
  %v462 = vrot.slane %v461, 2
  %v463 = vadd.f32 %v461, %v462
  %v464 = vrot.slane %v463, 1
  %v465 = vadd.f32 %v463, %v464
  %v466 = vmul.f32 %v452, 0.015625
  %v467 = vmul.f32 %v465, 0.015625
  %v468 = vmul.f32 %v466, %v466
  %v469 = vsub.f32 %v467, %v468
  %v470 = vld [vmem:[%s4] sm:$0x1]
  %v471 = vadd.f32 %v469, 1e-05
  %v472 = vrsqrt.pop %v471
  %v473 = vmul.f32 %v470, %v472
  %v474 = vld [vmem:[%s5] sm:$0x1]
  %v475 = vmul.f32 %v466, %v473
  %v476 = vsub.f32 %v474, %v475
  %v478 = vlaneseq
  %v479 = vshrl.u32 %v478, 7
  %v480 = vsub.s32 0, %v479
  %v481 = vrot.slane %v473, %v480
  %v483 = vmul.f32 %v394, %v481
  %v484 = vmul.f32 %v399, %v481
  %v485 = vmul.f32 %v404, %v481
  %v486 = vmul.f32 %v409, %v481
  %v487 = vmul.f32 %v414, %v481
  %v488 = vmul.f32 %v419, %v481
  %v489 = vmul.f32 %v424, %v481
  %v490 = vmul.f32 %v429, %v481
  %v492 = vlaneseq
  %v493 = vshrl.u32 %v492, 7
  %v494 = vsub.s32 0, %v493
  %v495 = vrot.slane %v476, %v494
  %v497 = vadd.f32 %v483, %v495
  %v498 = vadd.f32 %v484, %v495
  %v499 = vadd.f32 %v485, %v495
  %v500 = vadd.f32 %v486, %v495
  %v501 = vadd.f32 %v487, %v495
  %v502 = vadd.f32 %v488, %v495
  %v503 = vadd.f32 %v489, %v495
  %v504 = vadd.f32 %v490, %v495
  %v505 = vmax.f32 %v497, 0.0
  %v506 = vmax.f32 %v498, 0.0
  %v507 = vmax.f32 %v499, 0.0
  %v508 = vmax.f32 %v500, 0.0
  %v509 = vmax.f32 %v501, 0.0
  %v510 = vmax.f32 %v502, 0.0
  %v511 = vmax.f32 %v503, 0.0
  %v512 = vmax.f32 %v504, 0.0
  %v513 = vld [vmem:[%s6] sm:$0xff]
  %v514 = vld [vmem:[%s6 + $0x8] sm:$0xff]
  %v515 = vld [vmem:[%s6 + $0x10] sm:$0xff]
  %v516 = vld [vmem:[%s6 + $0x18] sm:$0xff]
  %v517 = vld [vmem:[%s6 + $0x20] sm:$0xff]
  %v518 = vld [vmem:[%s6 + $0x28] sm:$0xff]
  %v519 = vld [vmem:[%s6 + $0x30] sm:$0xff]
  %v520 = vld [vmem:[%s6 + $0x38] sm:$0xff]
  %v521 = vld [vmem:[%s6 + $0x40] sm:$0xff]
  %v522 = vld [vmem:[%s6 + $0x48] sm:$0xff]
  %v523 = vld [vmem:[%s6 + $0x50] sm:$0xff]
  %v524 = vld [vmem:[%s6 + $0x58] sm:$0xff]
  %v525 = vld [vmem:[%s6 + $0x60] sm:$0xff]
  %v526 = vld [vmem:[%s6 + $0x68] sm:$0xff]
  %v527 = vld [vmem:[%s6 + $0x70] sm:$0xff]
  %v528 = vld [vmem:[%s6 + $0x78] sm:$0xff]
  %v529 = vld [vmem:[%s6 + $0x80] sm:$0xff]
  %v530 = vld [vmem:[%s6 + $0x88] sm:$0xff]
  %v531 = vld [vmem:[%s6 + $0x90] sm:$0xff]
  %v532 = vld [vmem:[%s6 + $0x98] sm:$0xff]
  %v533 = vld [vmem:[%s6 + $0xa0] sm:$0xff]
  %v534 = vld [vmem:[%s6 + $0xa8] sm:$0xff]
  %v535 = vld [vmem:[%s6 + $0xb0] sm:$0xff]
  %v536 = vld [vmem:[%s6 + $0xb8] sm:$0xff]
  %v537 = vld [vmem:[%s6 + $0xc0] sm:$0xff]
  %v538 = vld [vmem:[%s6 + $0xc8] sm:$0xff]
  %v539 = vld [vmem:[%s6 + $0xd0] sm:$0xff]
  %v540 = vld [vmem:[%s6 + $0xd8] sm:$0xff]
  %v541 = vld [vmem:[%s6 + $0xe0] sm:$0xff]
  %v542 = vld [vmem:[%s6 + $0xe8] sm:$0xff]
  %v543 = vld [vmem:[%s6 + $0xf0] sm:$0xff]
  %v544 = vld [vmem:[%s6 + $0xf8] sm:$0xff]
  %v545 = vld [vmem:[%s6 + $0x100] sm:$0xff]
  %v546 = vld [vmem:[%s6 + $0x108] sm:$0xff]
  %v547 = vld [vmem:[%s6 + $0x110] sm:$0xff]
  %v548 = vld [vmem:[%s6 + $0x118] sm:$0xff]
  %v549 = vld [vmem:[%s6 + $0x120] sm:$0xff]
  %v550 = vld [vmem:[%s6 + $0x128] sm:$0xff]
  %v551 = vld [vmem:[%s6 + $0x130] sm:$0xff]
  %v552 = vld [vmem:[%s6 + $0x138] sm:$0xff]
  %v553 = vld [vmem:[%s6 + $0x140] sm:$0xff]
  %v554 = vld [vmem:[%s6 + $0x148] sm:$0xff]
  %v555 = vld [vmem:[%s6 + $0x150] sm:$0xff]
  %v556 = vld [vmem:[%s6 + $0x158] sm:$0xff]
  %v557 = vld [vmem:[%s6 + $0x160] sm:$0xff]
  %v558 = vld [vmem:[%s6 + $0x168] sm:$0xff]
  %v559 = vld [vmem:[%s6 + $0x170] sm:$0xff]
  %v560 = vld [vmem:[%s6 + $0x178] sm:$0xff]
  %v561 = vld [vmem:[%s6 + $0x180] sm:$0xff]
  %v562 = vld [vmem:[%s6 + $0x188] sm:$0xff]
  %v563 = vld [vmem:[%s6 + $0x190] sm:$0xff]
  %v564 = vld [vmem:[%s6 + $0x198] sm:$0xff]
  %v565 = vld [vmem:[%s6 + $0x1a0] sm:$0xff]
  %v566 = vld [vmem:[%s6 + $0x1a8] sm:$0xff]
  %v567 = vld [vmem:[%s6 + $0x1b0] sm:$0xff]
  %v568 = vld [vmem:[%s6 + $0x1b8] sm:$0xff]
  %v569 = vld [vmem:[%s6 + $0x1c0] sm:$0xff]
  %v570 = vld [vmem:[%s6 + $0x1c8] sm:$0xff]
  %v571 = vld [vmem:[%s6 + $0x1d0] sm:$0xff]
  %v572 = vld [vmem:[%s6 + $0x1d8] sm:$0xff]
  %v573 = vld [vmem:[%s6 + $0x1e0] sm:$0xff]
  %v574 = vld [vmem:[%s6 + $0x1e8] sm:$0xff]
  %v575 = vld [vmem:[%s6 + $0x1f0] sm:$0xff]
  %v576 = vld [vmem:[%s6 + $0x1f8] sm:$0xff]
  %577 = vmatprep.subr.mxu0 %v514
  %578 = vmatpush1.msra.mxu0 %v513
  %579 = vmatprep.subr.mxu0 %v518
  %580 = vmatpush1.msra.mxu0 %v517
  %581 = vmatprep.subr.mxu0 %v522
  %582 = vmatpush1.msra.mxu0 %v521
  %583 = vmatprep.subr.mxu0 %v526
  %584 = vmatpush1.msra.mxu0 %v525
  %585 = vmatprep.subr.mxu0 %v530
  %586 = vmatpush1.msra.mxu0 %v529
  %587 = vmatprep.subr.mxu0 %v534
  %588 = vmatpush1.msra.mxu0 %v533
  %589 = vmatprep.subr.mxu0 %v538
  %590 = vmatpush1.msra.mxu0 %v537
  %591 = vmatprep.subr.mxu0 %v542
  %592 = vmatpush1.msra.mxu0 %v541
  %593 = vmatprep.subr.mxu0 %v546
  %594 = vmatpush1.msra.mxu0 %v545
  %595 = vmatprep.subr.mxu0 %v550
  %596 = vmatpush1.msra.mxu0 %v549
  %597 = vmatprep.subr.mxu0 %v554
  %598 = vmatpush1.msra.mxu0 %v553
  %599 = vmatprep.subr.mxu0 %v558
  %600 = vmatpush1.msra.mxu0 %v557
  %601 = vmatprep.subr.mxu0 %v562
  %602 = vmatpush1.msra.mxu0 %v561
  %603 = vmatprep.subr.mxu0 %v566
  %604 = vmatpush1.msra.mxu0 %v565
  %605 = vmatprep.subr.mxu0 %v570
  %606 = vmatpush1.msra.mxu0 %v569
  %607 = vmatprep.subr.mxu0 %v574
  %608 = vmatpush1.msra.mxu0 %v573
  %609 = vmatprep.subr.mxu0 0.0
  %610 = vmatpush1.msra.mxu0 0.0
  %611 = vmatprep.subr.mxu0 0.0
  %612 = vmatpush1.msra.mxu0 0.0
  %613 = vmatprep.subr.mxu0 0.0
  %614 = vmatpush1.msra.mxu0 0.0
  %615 = vmatprep.subr.mxu0 0.0
  %616 = vmatpush1.msra.mxu0 0.0
  %617 = vmatprep.subr.mxu0 0.0
  %618 = vmatpush1.msra.mxu0 0.0
  %619 = vmatprep.subr.mxu0 0.0
  %620 = vmatpush1.msra.mxu0 0.0
  %621 = vmatprep.subr.mxu0 0.0
  %622 = vmatpush1.msra.mxu0 0.0
  %623 = vmatprep.subr.mxu0 0.0
  %624 = vmatpush1.msra.mxu0 0.0
  %625 = vmatprep.subr.mxu0 0.0
  %626 = vmatpush1.msra.mxu0 0.0
  %627 = vmatprep.subr.mxu0 0.0
  %628 = vmatpush1.msra.mxu0 0.0
  %629 = vmatprep.subr.mxu0 0.0
  %630 = vmatpush1.msra.mxu0 0.0
  %631 = vmatprep.subr.mxu0 0.0
  %632 = vmatpush1.msra.mxu0 0.0
  %633 = vmatprep.subr.mxu0 0.0
  %634 = vmatpush1.msra.mxu0 0.0
  %635 = vmatprep.subr.mxu0 0.0
  %636 = vmatpush1.msra.mxu0 0.0
  %637 = vmatprep.subr.mxu0 0.0
  %638 = vmatpush1.msra.mxu0 0.0
  %639 = vmatprep.subr.mxu0 0.0
  %640 = vmatpush1.msra.mxu0 0.0
  %641 = vmatprep.mubr.f32.mxu0 0.0
  %642 = vmatmul.mubr.f32.gmra.mrb[0].mxu0 %v505
  %v643 = vpop.f32.mrb[0].mxu0
  %v644 = vadd.f32 0.0, %v643
  %v645 = vpop.f32.mrb[0].mxu0
  %v646 = vadd.f32 0.0, %v645
  %647 = vmatprep.mubr.f32.mxu0 0.0
  %648 = vmatmul.mubr.f32.gmra.mrb[0].mxu0 %v506
  %v649 = vpop.f32.mrb[0].mxu0
  %v650 = vadd.f32 0.0, %v649
  %v651 = vpop.f32.mrb[0].mxu0
  %v652 = vadd.f32 0.0, %v651
  %653 = vmatprep.mubr.f32.mxu0 0.0
  %654 = vmatmul.mubr.f32.gmra.mrb[0].mxu0 %v507
  %v655 = vpop.f32.mrb[0].mxu0
  %v656 = vadd.f32 0.0, %v655
  %v657 = vpop.f32.mrb[0].mxu0
  %v658 = vadd.f32 0.0, %v657
  %659 = vmatprep.mubr.f32.mxu0 0.0
  %660 = vmatmul.mubr.f32.gmra.mrb[0].mxu0 %v508
  %v661 = vpop.f32.mrb[0].mxu0
  %v662 = vadd.f32 0.0, %v661
  %v663 = vpop.f32.mrb[0].mxu0
  %v664 = vadd.f32 0.0, %v663
  %665 = vmatprep.mubr.f32.mxu0 0.0
  %666 = vmatmul.mubr.f32.gmra.mrb[0].mxu0 %v509
  %v667 = vpop.f32.mrb[0].mxu0
  %v668 = vadd.f32 0.0, %v667
  %v669 = vpop.f32.mrb[0].mxu0
  %v670 = vadd.f32 0.0, %v669
  %671 = vmatprep.mubr.f32.mxu0 0.0
  %672 = vmatmul.mubr.f32.gmra.mrb[0].mxu0 %v510
  %v673 = vpop.f32.mrb[0].mxu0
  %v674 = vadd.f32 0.0, %v673
  %v675 = vpop.f32.mrb[0].mxu0
  %v676 = vadd.f32 0.0, %v675
  %677 = vmatprep.mubr.f32.mxu0 0.0
  %678 = vmatmul.mubr.f32.gmra.mrb[0].mxu0 %v511
  %v679 = vpop.f32.mrb[0].mxu0
  %v680 = vadd.f32 0.0, %v679
  %v681 = vpop.f32.mrb[0].mxu0
  %v682 = vadd.f32 0.0, %v681
  %683 = vmatprep.mubr.f32.mxu0 0.0
  %684 = vmatmul.mubr.f32.gmra.mrb[0].mxu0 %v512
  %v685 = vpop.f32.mrb[0].mxu0
  %v686 = vadd.f32 0.0, %v685
  %v687 = vpop.f32.mrb[0].mxu0
  %v688 = vadd.f32 0.0, %v687
  %689 = vdwg.mxu0
  %690 = vmatprep.subr.mxu0 %v516
  %691 = vmatpush1.msra.mxu0 %v515
  %692 = vmatprep.subr.mxu0 %v520
  %693 = vmatpush1.msra.mxu0 %v519
  %694 = vmatprep.subr.mxu0 %v524
  %695 = vmatpush1.msra.mxu0 %v523
  %696 = vmatprep.subr.mxu0 %v528
  %697 = vmatpush1.msra.mxu0 %v527
  %698 = vmatprep.subr.mxu0 %v532
  %699 = vmatpush1.msra.mxu0 %v531
  %700 = vmatprep.subr.mxu0 %v536
  %701 = vmatpush1.msra.mxu0 %v535
  %702 = vmatprep.subr.mxu0 %v540
  %703 = vmatpush1.msra.mxu0 %v539
  %704 = vmatprep.subr.mxu0 %v544
  %705 = vmatpush1.msra.mxu0 %v543
  %706 = vmatprep.subr.mxu0 %v548
  %707 = vmatpush1.msra.mxu0 %v547
  %708 = vmatprep.subr.mxu0 %v552
  %709 = vmatpush1.msra.mxu0 %v551
  %710 = vmatprep.subr.mxu0 %v556
  %711 = vmatpush1.msra.mxu0 %v555
  %712 = vmatprep.subr.mxu0 %v560
  %713 = vmatpush1.msra.mxu0 %v559
  %714 = vmatprep.subr.mxu0 %v564
  %715 = vmatpush1.msra.mxu0 %v563
  %716 = vmatprep.subr.mxu0 %v568
  %717 = vmatpush1.msra.mxu0 %v567
  %718 = vmatprep.subr.mxu0 %v572
  %719 = vmatpush1.msra.mxu0 %v571
  %720 = vmatprep.subr.mxu0 %v576
  %721 = vmatpush1.msra.mxu0 %v575
  %722 = vmatprep.subr.mxu0 0.0
  %723 = vmatpush1.msra.mxu0 0.0
  %724 = vmatprep.subr.mxu0 0.0
  %725 = vmatpush1.msra.mxu0 0.0
  %726 = vmatprep.subr.mxu0 0.0
  %727 = vmatpush1.msra.mxu0 0.0
  %728 = vmatprep.subr.mxu0 0.0
  %729 = vmatpush1.msra.mxu0 0.0
  %730 = vmatprep.subr.mxu0 0.0
  %731 = vmatpush1.msra.mxu0 0.0
  %732 = vmatprep.subr.mxu0 0.0
  %733 = vmatpush1.msra.mxu0 0.0
  %734 = vmatprep.subr.mxu0 0.0
  %735 = vmatpush1.msra.mxu0 0.0
  %736 = vmatprep.subr.mxu0 0.0
  %737 = vmatpush1.msra.mxu0 0.0
  %738 = vmatprep.subr.mxu0 0.0
  %739 = vmatpush1.msra.mxu0 0.0
  %740 = vmatprep.subr.mxu0 0.0
  %741 = vmatpush1.msra.mxu0 0.0
  %742 = vmatprep.subr.mxu0 0.0
  %743 = vmatpush1.msra.mxu0 0.0
  %744 = vmatprep.subr.mxu0 0.0
  %745 = vmatpush1.msra.mxu0 0.0
  %746 = vmatprep.subr.mxu0 0.0
  %747 = vmatpush1.msra.mxu0 0.0
  %748 = vmatprep.subr.mxu0 0.0
  %749 = vmatpush1.msra.mxu0 0.0
  %750 = vmatprep.subr.mxu0 0.0
  %751 = vmatpush1.msra.mxu0 0.0
  %752 = vmatprep.subr.mxu0 0.0
  %753 = vmatpush1.msra.mxu0 0.0
  %754 = vmatprep.mubr.f32.mxu0 0.0
  %755 = vmatmul.mubr.f32.gmra.mrb[0].mxu0 %v505
  %v756 = vpop.f32.mrb[0].mxu0
  %v757 = vadd.f32 0.0, %v756
  %v758 = vpop.f32.mrb[0].mxu0
  %v759 = vadd.f32 0.0, %v758
  %760 = vmatprep.mubr.f32.mxu0 0.0
  %761 = vmatmul.mubr.f32.gmra.mrb[0].mxu0 %v506
  %v762 = vpop.f32.mrb[0].mxu0
  %v763 = vadd.f32 0.0, %v762
  %v764 = vpop.f32.mrb[0].mxu0
  %v765 = vadd.f32 0.0, %v764
  %766 = vmatprep.mubr.f32.mxu0 0.0
  %767 = vmatmul.mubr.f32.gmra.mrb[0].mxu0 %v507
  %v768 = vpop.f32.mrb[0].mxu0
  %v769 = vadd.f32 0.0, %v768
  %v770 = vpop.f32.mrb[0].mxu0
  %v771 = vadd.f32 0.0, %v770
  %772 = vmatprep.mubr.f32.mxu0 0.0
  %773 = vmatmul.mubr.f32.gmra.mrb[0].mxu0 %v508
  %v774 = vpop.f32.mrb[0].mxu0
  %v775 = vadd.f32 0.0, %v774
  %v776 = vpop.f32.mrb[0].mxu0
  %v777 = vadd.f32 0.0, %v776
  %778 = vmatprep.mubr.f32.mxu0 0.0
  %779 = vmatmul.mubr.f32.gmra.mrb[0].mxu0 %v509
  %v780 = vpop.f32.mrb[0].mxu0
  %v781 = vadd.f32 0.0, %v780
  %v782 = vpop.f32.mrb[0].mxu0
  %v783 = vadd.f32 0.0, %v782
  %784 = vmatprep.mubr.f32.mxu0 0.0
  %785 = vmatmul.mubr.f32.gmra.mrb[0].mxu0 %v510
  %v786 = vpop.f32.mrb[0].mxu0
  %v787 = vadd.f32 0.0, %v786
  %v788 = vpop.f32.mrb[0].mxu0
  %v789 = vadd.f32 0.0, %v788
  %790 = vmatprep.mubr.f32.mxu0 0.0
  %791 = vmatmul.mubr.f32.gmra.mrb[0].mxu0 %v511
  %v792 = vpop.f32.mrb[0].mxu0
  %v793 = vadd.f32 0.0, %v792
  %v794 = vpop.f32.mrb[0].mxu0
  %v795 = vadd.f32 0.0, %v794
  %796 = vmatprep.mubr.f32.mxu0 0.0
  %797 = vmatmul.mubr.f32.gmra.mrb[0].mxu0 %v512
  %v798 = vpop.f32.mrb[0].mxu0
  %v799 = vadd.f32 0.0, %v798
  %v800 = vpop.f32.mrb[0].mxu0
  %v801 = vadd.f32 0.0, %v800
  %802 = vdwg.mxu0
  %v803 = vld [vmem:[%s7] sm:$0x1]
  %v805 = vlaneseq
  %v806 = vshrl.u32 %v805, 7
  %v807 = vsub.s32 0, %v806
  %v808 = vrot.slane %v803, %v807
  %810 = vmatprep.subr.mxu0 0.0
  %811 = vmatpush1.msra.mxu0 %v644
  %812 = vmatprep.subr.mxu0 0.0
  %813 = vmatpush1.msra.mxu0 %v650
  %814 = vmatprep.subr.mxu0 0.0
  %815 = vmatpush1.msra.mxu0 %v656
  %816 = vmatprep.subr.mxu0 0.0
  %817 = vmatpush1.msra.mxu0 %v662
  %818 = vmatprep.subr.mxu0 0.0
  %819 = vmatpush1.msra.mxu0 %v668
  %820 = vmatprep.subr.mxu0 0.0
  %821 = vmatpush1.msra.mxu0 %v674
  %822 = vmatprep.subr.mxu0 0.0
  %823 = vmatpush1.msra.mxu0 %v680
  %824 = vmatprep.subr.mxu0 0.0
  %825 = vmatpush1.msra.mxu0 %v686
  %826 = vmatprep.subr.mxu0 0.0
  %827 = vmatpush1.msra.mxu0 %v646
  %828 = vmatprep.subr.mxu0 0.0
  %829 = vmatpush1.msra.mxu0 %v652
  %830 = vmatprep.subr.mxu0 0.0
  %831 = vmatpush1.msra.mxu0 %v658
  %832 = vmatprep.subr.mxu0 0.0
  %833 = vmatpush1.msra.mxu0 %v664
  %834 = vmatprep.subr.mxu0 0.0
  %835 = vmatpush1.msra.mxu0 %v670
  %836 = vmatprep.subr.mxu0 0.0
  %837 = vmatpush1.msra.mxu0 %v676
  %838 = vmatprep.subr.mxu0 0.0
  %839 = vmatpush1.msra.mxu0 %v682
  %840 = vmatprep.subr.mxu0 0.0
  %841 = vmatpush1.msra.mxu0 %v688
  %842 = vmatprep.subr.mxu0 0.0
  %843 = vmatpush1.msra.mxu0 %v757
  %844 = vmatprep.subr.mxu0 0.0
  %845 = vmatpush1.msra.mxu0 %v763
  %846 = vmatprep.subr.mxu0 0.0
  %847 = vmatpush1.msra.mxu0 %v769
  %848 = vmatprep.subr.mxu0 0.0
  %849 = vmatpush1.msra.mxu0 %v775
  %850 = vmatprep.subr.mxu0 0.0
  %851 = vmatpush1.msra.mxu0 %v781
  %852 = vmatprep.subr.mxu0 0.0
  %853 = vmatpush1.msra.mxu0 %v787
  %854 = vmatprep.subr.mxu0 0.0
  %855 = vmatpush1.msra.mxu0 %v793
  %856 = vmatprep.subr.mxu0 0.0
  %857 = vmatpush1.msra.mxu0 %v799
  %858 = vmatprep.subr.mxu0 0.0
  %859 = vmatpush1.msra.mxu0 %v759
  %860 = vmatprep.subr.mxu0 0.0
  %861 = vmatpush1.msra.mxu0 %v765
  %862 = vmatprep.subr.mxu0 0.0
  %863 = vmatpush1.msra.mxu0 %v771
  %864 = vmatprep.subr.mxu0 0.0
  %865 = vmatpush1.msra.mxu0 %v777
  %866 = vmatprep.subr.mxu0 0.0
  %867 = vmatpush1.msra.mxu0 %v783
  %868 = vmatprep.subr.mxu0 0.0
  %869 = vmatpush1.msra.mxu0 %v789
  %870 = vmatprep.subr.mxu0 0.0
  %871 = vmatpush1.msra.mxu0 %v795
  %872 = vmatprep.subr.mxu0 0.0
  %873 = vmatpush1.msra.mxu0 %v801
  %874 = vmatprep.mubr.f32.mxu0 %v50
  %875 = vmatmul.mubr.f32.gmra.mrb[0].mxu0 %v49
  %v876 = vpop.f32.mrb[0].mxu0
  %v877 = vadd.f32 %v808, %v876
  %v878 = vpop.f32.mrb[0].mxu0
  %879 = vmatprep.mubr.f32.mxu0 %v52
  %880 = vmatmul.mubr.f32.gmra.mrb[0].mxu0 %v51
  %v881 = vpop.f32.mrb[0].mxu0
  %v882 = vadd.f32 %v808, %v881
  %v883 = vpop.f32.mrb[0].mxu0
  %884 = vmatprep.mubr.f32.mxu0 %v54
  %885 = vmatmul.mubr.f32.gmra.mrb[0].mxu0 %v53
  %v886 = vpop.f32.mrb[0].mxu0
  %v887 = vadd.f32 %v808, %v886
  %v888 = vpop.f32.mrb[0].mxu0
  %889 = vmatprep.mubr.f32.mxu0 %v56
  %890 = vmatmul.mubr.f32.gmra.mrb[0].mxu0 %v55
  %v891 = vpop.f32.mrb[0].mxu0
  %v892 = vadd.f32 %v808, %v891
  %v893 = vpop.f32.mrb[0].mxu0
  %894 = vmatprep.mubr.f32.mxu0 %v58
  %895 = vmatmul.mubr.f32.gmra.mrb[0].mxu0 %v57
  %v896 = vpop.f32.mrb[0].mxu0
  %v897 = vadd.f32 %v808, %v896
  %v898 = vpop.f32.mrb[0].mxu0
  %899 = vmatprep.mubr.f32.mxu0 %v60
  %900 = vmatmul.mubr.f32.gmra.mrb[0].mxu0 %v59
  %v901 = vpop.f32.mrb[0].mxu0
  %v902 = vadd.f32 %v808, %v901
  %v903 = vpop.f32.mrb[0].mxu0
  %904 = vmatprep.mubr.f32.mxu0 %v62
  %905 = vmatmul.mubr.f32.gmra.mrb[0].mxu0 %v61
  %v906 = vpop.f32.mrb[0].mxu0
  %v907 = vadd.f32 %v808, %v906
  %v908 = vpop.f32.mrb[0].mxu0
  %909 = vmatprep.mubr.f32.mxu0 %v64
  %910 = vmatmul.mubr.f32.gmra.mrb[0].mxu0 %v63
  %v911 = vpop.f32.mrb[0].mxu0
  %v912 = vadd.f32 %v808, %v911
  %v913 = vpop.f32.mrb[0].mxu0
  %914 = vdwg.mxu0
  %v915 = vmul.f32 %v877, %v877
  %v916 = vmul.f32 %v882, %v882
  %v917 = vmul.f32 %v887, %v887
  %v918 = vmul.f32 %v892, %v892
  %v919 = vmul.f32 %v897, %v897
  %v920 = vmul.f32 %v902, %v902
  %v921 = vmul.f32 %v907, %v907
  %v922 = vmul.f32 %v912, %v912
  %v923 = vadd.f32 %v877, %v882
  %v924 = vadd.f32 %v923, %v887
  %v925 = vadd.f32 %v924, %v892
  %v926 = vadd.f32 %v925, %v897
  %v927 = vadd.f32 %v926, %v902
  %v928 = vadd.f32 %v927, %v907
  %v929 = vadd.f32 %v928, %v912
  %v930 = vrot.slane %v929, 4
  %v931 = vadd.f32 %v929, %v930
  %v932 = vrot.slane %v931, 2
  %v933 = vadd.f32 %v931, %v932
  %v934 = vrot.slane %v933, 1
  %v935 = vadd.f32 %v933, %v934
  %v936 = vadd.f32 %v915, %v916
  %v937 = vadd.f32 %v936, %v917
  %v938 = vadd.f32 %v937, %v918
  %v939 = vadd.f32 %v938, %v919
  %v940 = vadd.f32 %v939, %v920
  %v941 = vadd.f32 %v940, %v921
  %v942 = vadd.f32 %v941, %v922
  %v943 = vrot.slane %v942, 4
  %v944 = vadd.f32 %v942, %v943
  %v945 = vrot.slane %v944, 2
  %v946 = vadd.f32 %v944, %v945
  %v947 = vrot.slane %v946, 1
  %v948 = vadd.f32 %v946, %v947
  %v949 = vmul.f32 %v935, 0.015625
  %v950 = vmul.f32 %v948, 0.015625
  %v951 = vmul.f32 %v949, %v949
  %v952 = vsub.f32 %v950, %v951
  %v953 = vld [vmem:[%s8] sm:$0x1]
  %v954 = vadd.f32 %v952, 1e-05
  %v955 = vrsqrt.pop %v954
  %v956 = vmul.f32 %v953, %v955
  %v957 = vld [vmem:[%s9] sm:$0x1]
  %v958 = vmul.f32 %v949, %v956
  %v959 = vsub.f32 %v957, %v958
  %v961 = vlaneseq
  %v962 = vshrl.u32 %v961, 7
  %v963 = vsub.s32 0, %v962
  %v964 = vrot.slane %v956, %v963
  %v966 = vmul.f32 %v877, %v964
  %v967 = vmul.f32 %v882, %v964
  %v968 = vmul.f32 %v887, %v964
  %v969 = vmul.f32 %v892, %v964
  %v970 = vmul.f32 %v897, %v964
  %v971 = vmul.f32 %v902, %v964
  %v972 = vmul.f32 %v907, %v964
  %v973 = vmul.f32 %v912, %v964
  %v975 = vlaneseq
  %v976 = vshrl.u32 %v975, 7
  %v977 = vsub.s32 0, %v976
  %v978 = vrot.slane %v959, %v977
  %v980 = vadd.f32 %v966, %v978
  %v981 = vadd.f32 %v967, %v978
  %v982 = vadd.f32 %v968, %v978
  %v983 = vadd.f32 %v969, %v978
  %v984 = vadd.f32 %v970, %v978
  %v985 = vadd.f32 %v971, %v978
  %v986 = vadd.f32 %v972, %v978
  %v987 = vadd.f32 %v973, %v978
  %v988 = vmax.f32 %v980, 0.0
  %v989 = vmax.f32 %v981, 0.0
  %v990 = vmax.f32 %v982, 0.0
  %v991 = vmax.f32 %v983, 0.0
  %v992 = vmax.f32 %v984, 0.0
  %v993 = vmax.f32 %v985, 0.0
  %v994 = vmax.f32 %v986, 0.0
  %v995 = vmax.f32 %v987, 0.0
  %v996 = vld [vmem:[%s10] sm:$0xff]
  %v997 = vld [vmem:[%s10 + $0x8] sm:$0xff]
  %v998 = vld [vmem:[%s10 + $0x10] sm:$0xff]
  %v999 = vld [vmem:[%s10 + $0x18] sm:$0xff]
  %v1000 = vld [vmem:[%s10 + $0x20] sm:$0xff]
  %v1001 = vld [vmem:[%s10 + $0x28] sm:$0xff]
  %v1002 = vld [vmem:[%s10 + $0x30] sm:$0xff]
  %v1003 = vld [vmem:[%s10 + $0x38] sm:$0xff]
  %v1004 = vld [vmem:[%s10 + $0x40] sm:$0xff]
  %v1005 = vld [vmem:[%s10 + $0x48] sm:$0xff]
  %v1006 = vld [vmem:[%s10 + $0x50] sm:$0xff]
  %v1007 = vld [vmem:[%s10 + $0x58] sm:$0xff]
  %v1008 = vld [vmem:[%s10 + $0x60] sm:$0xff]
  %v1009 = vld [vmem:[%s10 + $0x68] sm:$0xff]
  %v1010 = vld [vmem:[%s10 + $0x70] sm:$0xff]
  %v1011 = vld [vmem:[%s10 + $0x78] sm:$0xff]
  %v1012 = vld [vmem:[%s11] sm:$0x1]
  %v1014 = vlaneseq
  %v1015 = vshrl.u32 %v1014, 7
  %v1016 = vsub.s32 0, %v1015
  %v1017 = vrot.slane %v1012, %v1016
  %1019 = vmatprep.subr.mxu0 0.0
  %1020 = vmatpush1.msra.mxu0 %v996
  %1021 = vmatprep.subr.mxu0 0.0
  %1022 = vmatpush1.msra.mxu0 %v997
  %1023 = vmatprep.subr.mxu0 0.0
  %1024 = vmatpush1.msra.mxu0 %v998
  %1025 = vmatprep.subr.mxu0 0.0
  %1026 = vmatpush1.msra.mxu0 %v999
  %1027 = vmatprep.subr.mxu0 0.0
  %1028 = vmatpush1.msra.mxu0 %v1000
  %1029 = vmatprep.subr.mxu0 0.0
  %1030 = vmatpush1.msra.mxu0 %v1001
  %1031 = vmatprep.subr.mxu0 0.0
  %1032 = vmatpush1.msra.mxu0 %v1002
  %1033 = vmatprep.subr.mxu0 0.0
  %1034 = vmatpush1.msra.mxu0 %v1003
  %1035 = vmatprep.subr.mxu0 0.0
  %1036 = vmatpush1.msra.mxu0 %v1004
  %1037 = vmatprep.subr.mxu0 0.0
  %1038 = vmatpush1.msra.mxu0 %v1005
  %1039 = vmatprep.subr.mxu0 0.0
  %1040 = vmatpush1.msra.mxu0 %v1006
  %1041 = vmatprep.subr.mxu0 0.0
  %1042 = vmatpush1.msra.mxu0 %v1007
  %1043 = vmatprep.subr.mxu0 0.0
  %1044 = vmatpush1.msra.mxu0 %v1008
  %1045 = vmatprep.subr.mxu0 0.0
  %1046 = vmatpush1.msra.mxu0 %v1009
  %1047 = vmatprep.subr.mxu0 0.0
  %1048 = vmatpush1.msra.mxu0 %v1010
  %1049 = vmatprep.subr.mxu0 0.0
  %1050 = vmatpush1.msra.mxu0 %v1011
  %1051 = vmatprep.subr.mxu0 0.0
  %1052 = vmatpush1.msra.mxu0 0.0
  %1053 = vmatprep.subr.mxu0 0.0
  %1054 = vmatpush1.msra.mxu0 0.0
  %1055 = vmatprep.subr.mxu0 0.0
  %1056 = vmatpush1.msra.mxu0 0.0
  %1057 = vmatprep.subr.mxu0 0.0
  %1058 = vmatpush1.msra.mxu0 0.0
  %1059 = vmatprep.subr.mxu0 0.0
  %1060 = vmatpush1.msra.mxu0 0.0
  %1061 = vmatprep.subr.mxu0 0.0
  %1062 = vmatpush1.msra.mxu0 0.0
  %1063 = vmatprep.subr.mxu0 0.0
  %1064 = vmatpush1.msra.mxu0 0.0
  %1065 = vmatprep.subr.mxu0 0.0
  %1066 = vmatpush1.msra.mxu0 0.0
  %1067 = vmatprep.subr.mxu0 0.0
  %1068 = vmatpush1.msra.mxu0 0.0
  %1069 = vmatprep.subr.mxu0 0.0
  %1070 = vmatpush1.msra.mxu0 0.0
  %1071 = vmatprep.subr.mxu0 0.0
  %1072 = vmatpush1.msra.mxu0 0.0
  %1073 = vmatprep.subr.mxu0 0.0
  %1074 = vmatpush1.msra.mxu0 0.0
  %1075 = vmatprep.subr.mxu0 0.0
  %1076 = vmatpush1.msra.mxu0 0.0
  %1077 = vmatprep.subr.mxu0 0.0
  %1078 = vmatpush1.msra.mxu0 0.0
  %1079 = vmatprep.subr.mxu0 0.0
  %1080 = vmatpush1.msra.mxu0 0.0
  %1081 = vmatprep.subr.mxu0 0.0
  %1082 = vmatpush1.msra.mxu0 0.0
  %1083 = vmatprep.mubr.f32.mxu0 0.0
  %1084 = vmatmul.mubr.f32.gmra.mrb[0].mxu0 %v988
  %v1085 = vpop.f32.mrb[0].mxu0
  %v1086 = vadd.f32 %v1017, %v1085
  %v1087 = vpop.f32.mrb[0].mxu0
  %1088 = vmatprep.mubr.f32.mxu0 0.0
  %1089 = vmatmul.mubr.f32.gmra.mrb[0].mxu0 %v989
  %v1090 = vpop.f32.mrb[0].mxu0
  %v1091 = vadd.f32 %v1017, %v1090
  %v1092 = vpop.f32.mrb[0].mxu0
  %1093 = vmatprep.mubr.f32.mxu0 0.0
  %1094 = vmatmul.mubr.f32.gmra.mrb[0].mxu0 %v990
  %v1095 = vpop.f32.mrb[0].mxu0
  %v1096 = vadd.f32 %v1017, %v1095
  %v1097 = vpop.f32.mrb[0].mxu0
  %1098 = vmatprep.mubr.f32.mxu0 0.0
  %1099 = vmatmul.mubr.f32.gmra.mrb[0].mxu0 %v991
  %v1100 = vpop.f32.mrb[0].mxu0
  %v1101 = vadd.f32 %v1017, %v1100
  %v1102 = vpop.f32.mrb[0].mxu0
  %1103 = vmatprep.mubr.f32.mxu0 0.0
  %1104 = vmatmul.mubr.f32.gmra.mrb[0].mxu0 %v992
  %v1105 = vpop.f32.mrb[0].mxu0
  %v1106 = vadd.f32 %v1017, %v1105
  %v1107 = vpop.f32.mrb[0].mxu0
  %1108 = vmatprep.mubr.f32.mxu0 0.0
  %1109 = vmatmul.mubr.f32.gmra.mrb[0].mxu0 %v993
  %v1110 = vpop.f32.mrb[0].mxu0
  %v1111 = vadd.f32 %v1017, %v1110
  %v1112 = vpop.f32.mrb[0].mxu0
  %1113 = vmatprep.mubr.f32.mxu0 0.0
  %1114 = vmatmul.mubr.f32.gmra.mrb[0].mxu0 %v994
  %v1115 = vpop.f32.mrb[0].mxu0
  %v1116 = vadd.f32 %v1017, %v1115
  %v1117 = vpop.f32.mrb[0].mxu0
  %1118 = vmatprep.mubr.f32.mxu0 0.0
  %1119 = vmatmul.mubr.f32.gmra.mrb[0].mxu0 %v995
  %v1120 = vpop.f32.mrb[0].mxu0
  %v1121 = vadd.f32 %v1017, %v1120
  %v1122 = vpop.f32.mrb[0].mxu0
  %1123 = vdwg.mxu0
  %1124 = vmax.xlane.f32.xlu0 %v1086
  %v1125 = vpop.xlane.xlu0 %1124
  %1126 = vmax.xlane.f32.xlu0 %v1091
  %v1127 = vpop.xlane.xlu0 %1126
  %1128 = vmax.xlane.f32.xlu0 %v1096
  %v1129 = vpop.xlane.xlu0 %1128
  %1130 = vmax.xlane.f32.xlu0 %v1101
  %v1131 = vpop.xlane.xlu0 %1130
  %1132 = vmax.xlane.f32.xlu0 %v1106
  %v1133 = vpop.xlane.xlu0 %1132
  %1134 = vmax.xlane.f32.xlu0 %v1111
  %v1135 = vpop.xlane.xlu0 %1134
  %1136 = vmax.xlane.f32.xlu0 %v1116
  %v1137 = vpop.xlane.xlu0 %1136
  %1138 = vmax.xlane.f32.xlu0 %v1121
  %v1139 = vpop.xlane.xlu0 %1138
  %v1140 = vsub.f32 %v1086, %v1125
  %v1141 = vsub.f32 %v1091, %v1127
  %v1142 = vsub.f32 %v1096, %v1129
  %v1143 = vsub.f32 %v1101, %v1131
  %v1144 = vsub.f32 %v1106, %v1133
  %v1145 = vsub.f32 %v1111, %v1135
  %v1146 = vsub.f32 %v1116, %v1137
  %v1147 = vsub.f32 %v1121, %v1139
  %v1148 = vmul.f32 %v1140, 1.442695
  %v1149 = vpow.pop %v1148
  %v1150 = vmul.f32 %v1141, 1.442695
  %v1151 = vpow.pop %v1150
  %v1152 = vmul.f32 %v1142, 1.442695
  %v1153 = vpow.pop %v1152
  %v1154 = vmul.f32 %v1143, 1.442695
  %v1155 = vpow.pop %v1154
  %v1156 = vmul.f32 %v1144, 1.442695
  %v1157 = vpow.pop %v1156
  %v1158 = vmul.f32 %v1145, 1.442695
  %v1159 = vpow.pop %v1158
  %v1160 = vmul.f32 %v1146, 1.442695
  %v1161 = vpow.pop %v1160
  %v1162 = vmul.f32 %v1147, 1.442695
  %v1163 = vpow.pop %v1162
  %1164 = vadd.xlane.f32.xlu0 %v1149
  %v1165 = vpop.xlane.xlu0 %1164
  %1166 = vadd.xlane.f32.xlu0 %v1151
  %v1167 = vpop.xlane.xlu0 %1166
  %1168 = vadd.xlane.f32.xlu0 %v1153
  %v1169 = vpop.xlane.xlu0 %1168
  %1170 = vadd.xlane.f32.xlu0 %v1155
  %v1171 = vpop.xlane.xlu0 %1170
  %1172 = vadd.xlane.f32.xlu0 %v1157
  %v1173 = vpop.xlane.xlu0 %1172
  %1174 = vadd.xlane.f32.xlu0 %v1159
  %v1175 = vpop.xlane.xlu0 %1174
  %1176 = vadd.xlane.f32.xlu0 %v1161
  %v1177 = vpop.xlane.xlu0 %1176
  %1178 = vadd.xlane.f32.xlu0 %v1163
  %v1179 = vpop.xlane.xlu0 %1178
  %v1180 = vlog2.pop %v1165
  %v1181 = vmul.f32 %v1180, 0.6931472
  %v1182 = vlog2.pop %v1167
  %v1183 = vmul.f32 %v1182, 0.6931472
  %v1184 = vlog2.pop %v1169
  %v1185 = vmul.f32 %v1184, 0.6931472
  %v1186 = vlog2.pop %v1171
  %v1187 = vmul.f32 %v1186, 0.6931472
  %v1188 = vlog2.pop %v1173
  %v1189 = vmul.f32 %v1188, 0.6931472
  %v1190 = vlog2.pop %v1175
  %v1191 = vmul.f32 %v1190, 0.6931472
  %v1192 = vlog2.pop %v1177
  %v1193 = vmul.f32 %v1192, 0.6931472
  %v1194 = vlog2.pop %v1179
  %v1195 = vmul.f32 %v1194, 0.6931472
  %v1196 = vsub.f32 %v1140, %v1181
  %v1197 = vsub.f32 %v1141, %v1183
  %v1198 = vsub.f32 %v1142, %v1185
  %v1199 = vsub.f32 %v1143, %v1187
  %v1200 = vsub.f32 %v1144, %v1189
  %v1201 = vsub.f32 %v1145, %v1191
  %v1202 = vsub.f32 %v1146, %v1193
  %v1203 = vsub.f32 %v1147, %v1195
  %1204 = vst [vmem:[%s12] sm:$0xff] %v1196
  %1205 = vst [vmem:[%s12 + $0x8] sm:$0xff] %v1197
  %1206 = vst [vmem:[%s12 + $0x10] sm:$0xff] %v1198
  %1207 = vst [vmem:[%s12 + $0x18] sm:$0xff] %v1199
  %1208 = vst [vmem:[%s12 + $0x20] sm:$0xff] %v1200
  %1209 = vst [vmem:[%s12 + $0x28] sm:$0xff] %v1201
  %1210 = vst [vmem:[%s12 + $0x30] sm:$0xff] %v1202
  %1211 = vst [vmem:[%s12 + $0x38] sm:$0xff] %v1203
  // Predicated region
  $region50: #{rgcn_node_forward.1} parent=0 // pred_check
    _
  $region51: #{rgcn_node_forward.1} parent=0 // pred_check_branch
    %1213 = sbr.rel (0) target = $region53
  $region52: #{rgcn_node_forward.1} parent=0 // pred_region
    _
  $region53: #{rgcn_node_forward.1} parent=0 // pred_fallthru
    _
  // Predicated region
  $region54: #{rgcn_node_forward.1} parent=0 // pred_check
    _
  $region55: #{rgcn_node_forward.1} parent=0 // pred_check_branch
    %1215 = sbr.rel (0) target = $region57
  $region56: #{rgcn_node_forward.1} parent=0 // pred_region
    _
  $region57: #{rgcn_node_forward.1} parent=0 // pred_fallthru
    _

</llo_original>
